<compile_context>
chip_gen: v6e
topology: v6e:2x2x1
jax: 0.10.0
libtpu: 0.0.40
codegen_flags: <defaults>
</compile_context>

<pallas_src>
import jax
import jax.numpy as jnp
from jax.experimental import pallas as pl
from jax.experimental.pallas import tpu as pltpu


def _flatten_copy_kernel(x_ref, o_ref):
    # Pure data movement: copy the current tile into the output tile.
    o_ref[...] = x_ref[...]


# Lane widths to try for the lane-dense slab (largest first).
_LANE_CANDIDATES = (4096, 2048, 1024, 512, 256, 128)
# ~2 MiB per block -> <= ~8 MiB resident with double-buffered in + out tiles.
_TARGET_BLOCK_BYTES = 2 * 1024 * 1024


def flatten(x, out_features: int):
    """Equivalent of torch `x.view(-1, out_features)` with the copy done in Pallas."""
    total = x.size
    assert total % out_features == 0, "input numel must be divisible by out_features"
    out_rows = total // out_features
    dtype = x.dtype
    itemsize = jnp.dtype(dtype).itemsize

    # Pick a lane-dense width that evenly divides the total element count.
    lane = next((c for c in _LANE_CANDIDATES if total % c == 0), None)

    if lane is None:
        # Fallback for tiny / oddly sized inputs that cannot be lane-normalized:
        # single whole-array copy (no tiling).  Only hit for small tensors.
        x2d = jnp.reshape(x, (out_rows, out_features))
        return pl.pallas_call(
            _flatten_copy_kernel,
            out_shape=jax.ShapeDtypeStruct((out_rows, out_features), dtype),
        )(x2d)

    rows = total // lane

    # Row tile: multiple of 8 sized so one block is ~_TARGET_BLOCK_BYTES, or
    # the full row count when the array is smaller than one tile.
    tr = _TARGET_BLOCK_BYTES // (lane * itemsize)
    tr = max(8, (tr // 8) * 8)
    tr = min(tr, rows)

    grid = (pl.cdiv(rows, tr),)

    # Free row-major reshape into the lane-dense slab the kernel streams over.
    x2d = jnp.reshape(x, (rows, lane))

    y2d = pl.pallas_call(
        _flatten_copy_kernel,
        out_shape=jax.ShapeDtypeStruct((rows, lane), dtype),
        grid=grid,
        in_specs=[pl.BlockSpec((tr, lane), lambda i: (i, 0))],
        out_specs=pl.BlockSpec((tr, lane), lambda i: (i, 0)),
        compiler_params=pltpu.CompilerParams(
            dimension_semantics=("parallel",),
        ),
    )(x2d)

    # Free reshape back to the logical (batch-flattened) 2-D view.
    return jnp.reshape(y2d, (out_rows, out_features))


if __name__ == "__main__":
    key = jax.random.PRNGKey(0)
    # Small NCHW input: batch=2, channels=4, spatial=16x16.
    N, C, H, W = 2, 4, 16, 16
    out_features = C * H * W  # 1024 -> output shape (2, 1024)

    x = jax.random.normal(key, (N, C, H, W), dtype=jnp.float32)

    y = flatten(x, out_features)
    y = jax.block_until_ready(y)

    # Verify against the pure-JAX reference (same semantics as torch .view).
    ref = jnp.reshape(x, (-1, out_features))
    assert y.shape == (N, out_features), y.shape
    assert y.dtype == x.dtype
    assert bool(jnp.array_equal(y, ref))

    print("KERNEL_OK")
</pallas_src>

<mosaic_0001>
module attributes {stable_mosaic.version = 11 : i64} {
  func.func @_flatten_copy_kernel(%arg0: i32, %arg1: memref<1x2048xf32, #tpu.memory_space<vmem>>, %arg2: memref<1x2048xf32, #tpu.memory_space<vmem>>) attributes {dimension_semantics = [#tpu.dimension_semantics<parallel>], iteration_bounds = array<i64: 1>, scalar_prefetch = 0 : i64, scratch_operands = 0 : i64, tpu.core_type = #tpu.core_type<tc>, window_params = [{transform_indices = @transform_0, window_bounds = array<i64: 1, 2048>}, {transform_indices = @transform_1, window_bounds = array<i64: 1, 2048>}]} {
    %c0 = arith.constant 0 : index
    %c0_0 = arith.constant 0 : index
    %0 = vector.load %arg1[%c0, %c0_0] : memref<1x2048xf32, #tpu.memory_space<vmem>>, vector<1x2048xf32>
    %c0_1 = arith.constant 0 : index
    %c0_2 = arith.constant 0 : index
    %1 = vector.load %arg2[%c0_1, %c0_2] : memref<1x2048xf32, #tpu.memory_space<vmem>>, vector<1x2048xf32>
    tpu.vector_store %arg2[%c0_1, %c0_2], %0 {strides = array<i32>} : memref<1x2048xf32, #tpu.memory_space<vmem>>, vector<1x2048xf32>,
    return
  }
  func.func @transform_0(%arg0: i32) -> (i32, i32) {
    %c0_i32 = arith.constant 0 : i32
    %c0_i32_0 = arith.constant 0 : i32
    return %arg0, %c0_i32 : i32, i32
  }
  func.func @transform_1(%arg0: i32) -> (i32, i32) {
    %c0_i32 = arith.constant 0 : i32
    %c0_i32_0 = arith.constant 0 : i32
    return %arg0, %c0_i32 : i32, i32
  }
}

</mosaic_0001>

<llo_original>
// kernel: tpu_custom_call.1
$region0: #{tpu_custom_call.1}
  #allocation0 [shape = 'u32[]', space=smem, size = 0x4, offset = 0x4, fixed_abs, tag = 'smem constant byte address 0x4 - core index']
  #allocation1 [shape = 'u32[144,128]{1,0:T(1,128)}', space=vmem, size = 0x12000, scoped, tag = 'internal scratch']
  %s0 = inlined_call_operand.hbm [shape: f32[1,2048], index: 0, kind: input, shape index: {}]
  %s1 = inlined_call_operand.hbm [shape: f32[1,2048], index: 1, kind: output, shape index: {}]
  %s2 = sld [smem:[#allocation0]]
  $region18: #{tpu_custom_call.1} parent=0
    _
  %s4 = ssub.s32 1, %s2
  %s5 = scalar_select 0, %s4, %s2
  $region1: #{tpu_custom_call.1} parent=0
    #allocation2 [shape = 'u8[8192]{0}', space=vmem, size = 0x2000, scoped, tag = 'input window, operand 0, single buffered']
    #allocation3 [shape = 's32[1]{0}', space=sflag, size = 0x4, scoped, tag = 'scoped memory for tpu_custom_call.1']
    #allocation4 [shape = 's32[1]{0}', space=sflag, size = 0x4, scoped, tag = 'scoped memory for tpu_custom_call.1']
    #allocation5 [shape = 'u8[8192]{0}', space=vmem, size = 0x2000, scoped, tag = 'output window, operand 0, single buffered']
    %6 = vsyncpa [#allocation3], 0
    %7 = vsyncpa [#allocation4], 0
    // Predicated region
    $region2: #{tpu_custom_call.1} parent=1 // pred_check
      _
    $region3: #{tpu_custom_call.1} parent=1 // pred_check_branch
      %9 = sbr.rel (0) target = $region5
    $region4: #{tpu_custom_call.1} parent=1 // pred_region
      %s11 = ssub.s32 256, 256
      %12 = vsyncadd [#allocation3], %s11
      %s14 = sshll.u32 [#allocation2], 4
      %s15 = int_to_ptr.vmem [resolvable:$true] %s14
      %17 = dma.hbm_to_vmem [thread:$0]  %s0, 256, %s15, [#allocation3]
    $region5: #{tpu_custom_call.1} parent=1 // pred_fallthru
      _
    // Predicated region
    $region6: #{tpu_custom_call.1} parent=1 // pred_check
      _
    $region7: #{tpu_custom_call.1} parent=1 // pred_check_branch
      %19 = sbr.rel (0) target = $region9
    $region8: #{tpu_custom_call.1} parent=1 // pred_region
      %20 = dma.done [#allocation3], 256
    $region9: #{tpu_custom_call.1} parent=1 // pred_fallthru
      _
    %v21 = vld [vmem:[#allocation2] sm:$0xff]
    %v22 = vld [vmem:[#allocation2 + $0x8] sm:$0xff]
    %23 = vst [vmem:[#allocation5] sm:$0xff] %v21
    %24 = vst [vmem:[#allocation5 + $0x8] sm:$0xff] %v22
    // Predicated region
    $region10: #{tpu_custom_call.1} parent=1 // pred_check
      _
    $region11: #{tpu_custom_call.1} parent=1 // pred_check_branch
      %26 = sbr.rel (0) target = $region13
    $region12: #{tpu_custom_call.1} parent=1 // pred_region
      %s28 = ssub.s32 256, 256
      %29 = vsyncadd [#allocation4], %s28
      %s31 = sshll.u32 [#allocation5], 4
      %s32 = int_to_ptr.vmem [resolvable:$true] %s31
      %34 = dma.vmem_to_hbm [thread:$0]  %s32, 256, %s1, [#allocation4]
    $region13: #{tpu_custom_call.1} parent=1 // pred_fallthru
      _
    // Predicated region
    $region14: #{tpu_custom_call.1} parent=1 // pred_check
      _
    $region15: #{tpu_custom_call.1} parent=1 // pred_check_branch
      %36 = sbr.rel (0) target = $region17
    $region16: #{tpu_custom_call.1} parent=1 // pred_region
      %37 = dma.done [#allocation4], 256
    $region17: #{tpu_custom_call.1} parent=1 // pred_fallthru
      _
    %38 = vsyncpa [#allocation3], 1
    %39 = vsyncpa [#allocation4], 1

</llo_original>
